<compile_context>
chip_gen: v6e
topology: v6e:2x2x1
jax: 0.10.0
libtpu: 0.0.40
codegen_flags: <defaults>
</compile_context>

<pallas_src>
import functools

import jax
import jax.numpy as jnp
from jax.experimental import pallas as pl
from jax.experimental.pallas import tpu as pltpu


# --------------------------------------------------------------------------- #
# Kernel
# --------------------------------------------------------------------------- #
def _hybrid_pool_kernel(x_ref, *o_refs, w_bins, h_bins, cat):
    """Adaptive avg+max pooling of one (Nb, Ct) block.

    x_ref:
      h_bins is None : (Nb, Ct, OH, bh, W)   (H % OH == 0, pre-split in wrapper)
      h_bins given   : (Nb, Ct, H,  W)       uneven H bins, sliced per bin
    o_refs:
      cat=False : (out_ref,)          each (Nb, Ct, OH, OW)
      cat=True  : (avg_ref, max_ref)  each (Nb, Ct, OH, OW)
    w_bins / h_bins: static Python lists of (lo, hi) PyTorch floor/ceil bins.
    """
    if cat:
        avg_ref, max_ref = o_refs
    else:
        (out_ref,) = o_refs

    def store(a, m, i_lo, i_hi, j):
        # a: f32 average, m: input-dtype max; both (nb, ct, i_hi - i_lo, 1).
        if cat:
            avg_ref[:, :, i_lo:i_hi, j:j + 1] = a.astype(avg_ref.dtype)
            max_ref[:, :, i_lo:i_hi, j:j + 1] = m.astype(max_ref.dtype)
        else:
            out_ref[:, :, i_lo:i_hi, j:j + 1] = (
                0.5 * (a + m.astype(jnp.float32))).astype(out_ref.dtype)

    x = x_ref[...]

    if h_bins is None:
        # ----- Evenly divisible H bins: one fused sublane reduction. -----
        oh, bh = x.shape[2], x.shape[3]
        sum_h = jnp.sum(x, axis=3, dtype=jnp.float32)   # (nb, ct, oh, w) f32
        max_h = jnp.max(x, axis=3)                       # (nb, ct, oh, w)
        for j, (w0, w1) in enumerate(w_bins):
            inv_area = 1.0 / float(bh * (w1 - w0))
            a = jnp.sum(sum_h[..., w0:w1], axis=-1, keepdims=True) * inv_area
            m = jnp.max(max_h[..., w0:w1], axis=-1, keepdims=True)
            store(a, m, 0, oh, j)                        # (nb, ct, oh, 1)
    else:
        # ----- Uneven H bins (PyTorch floor/ceil): reduce H once per bin,
        #       reuse the reduced row for every W bin. -----
        for i, (h0, h1) in enumerate(h_bins):
            xi = x[:, :, h0:h1, :]
            sum_h = jnp.sum(xi, axis=2, keepdims=True, dtype=jnp.float32)
            max_h = jnp.max(xi, axis=2, keepdims=True)   # (nb, ct, 1, w)
            for j, (w0, w1) in enumerate(w_bins):
                inv_area = 1.0 / float((h1 - h0) * (w1 - w0))
                a = jnp.sum(sum_h[..., w0:w1], axis=-1, keepdims=True) * inv_area
                m = jnp.max(max_h[..., w0:w1], axis=-1, keepdims=True)
                store(a, m, i, i + 1, j)                 # (nb, ct, 1, 1)


# --------------------------------------------------------------------------- #
# Tiling / budgeting helpers
# --------------------------------------------------------------------------- #
def _round_up(v, m):
    return ((v + m - 1) // m) * m


def _vmem_capacity_bytes():
    """Generation-aware VMEM capacity (v5e/v6e: 128 MiB, v7x: 64 MiB)."""
    try:
        cap = getattr(pltpu.get_tpu_info(), "vmem_capacity_bytes", None)
        if cap:
            return int(cap)
    except Exception:
        pass
    return 64 * 1024 * 1024   # conservative (v7x) fallback


def _pick_tiles(N, C, per_nc_bytes, budget):
    """Pick (Nb, Ct) divisor tiles.

    per_nc_bytes is the *padded* VMEM footprint of one (n, c) slab.  Maximize
    block size under `budget` (double-buffered by Pallas), then make sure the
    parallel grid has >= 2 steps (v7x has 2 TensorCores, and pipelining needs
    more than one step), preferring >= 4 steps as long as blocks stay >= ~1 MiB.
    """
    divs_n = [d for d in range(1, N + 1) if N % d == 0]
    divs_c = [d for d in range(1, C + 1) if C % d == 0]
    Ct = max([d for d in divs_c if d * per_nc_bytes <= budget] or [1])
    Nb = max([d for d in divs_n if d * Ct * per_nc_bytes <= budget] or [1])

    MIN_BLOCK = 1 << 20  # ~1 MiB keeps the ~0.35 us per-step overhead amortized

    def steps():
        return (N // Nb) * (C // Ct)

    while steps() < 4 and (Nb > 1 or Ct > 1):
        if steps() >= 2 and Nb * Ct * per_nc_bytes <= MIN_BLOCK:
            break
        if Nb > 1:                      # shrink batch first (keeps DMA rows long)
            Nb = max(d for d in divs_n if d < Nb)
        else:
            Ct = max(d for d in divs_c if d < Ct)
    return Nb, Ct


# --------------------------------------------------------------------------- #
# Wrapper (forward pass of AdaptiveHybridPool2d)
# --------------------------------------------------------------------------- #
def adaptive_hybrid_pool2d(x, output_size, cat=False):
    """Pallas equivalent of AdaptiveHybridPool2d.forward.  x is NCHW."""
    if isinstance(output_size, int):
        OH = OW = output_size
    else:
        OH, OW = output_size
    N, C, H, W = x.shape
    itemsize = jnp.dtype(x.dtype).itemsize

    # PyTorch floor/ceil adaptive bins (identical to an even split when divisible).
    w_bins = [((j * W) // OW, ((j + 1) * W + OW - 1) // OW) for j in range(OW)]

    if H % OH == 0:
        bh = H // OH
        # Copy-free row-major reshape: H-direction bins become a full block axis,
        # so the kernel pools H with a single fused reduction (no relayout).
        x_in = x.reshape(N, C, OH, bh, W)
        h_bins = None
        blk_tail, zeros_tail = (OH, bh, W), (0, 0, 0)
        per_nc = OH * _round_up(bh, 8) * _round_up(W, 128) * itemsize
    else:
        x_in = x
        h_bins = [((i * H) // OH, ((i + 1) * H + OH - 1) // OH) for i in range(OH)]
        blk_tail, zeros_tail = (H, W), (0, 0)
        per_nc = _round_up(H, 8) * _round_up(W, 128) * itemsize

    # VMEM budgets: cap//8 per input block leaves room for the 2x double
    # buffer, the f32 H-reduction intermediates and the (tiny) output buffers
    # inside a scoped limit of cap//2 (<= 64 MiB): v6e/v5e -> 16 MiB blocks /
    # 64 MiB limit, v7x -> 8 MiB blocks / 32 MiB limit.
    cap = _vmem_capacity_bytes()
    budget = cap // 8
    vmem_limit = min(cap // 2, 64 * 1024 * 1024)

    Nb, Ct = _pick_tiles(N, C, per_nc, budget)
    grid = (N // Nb, C // Ct)

    in_spec = pl.BlockSpec((Nb, Ct) + blk_tail, lambda n, c: (n, c) + zeros_tail)
    out_spec = pl.BlockSpec((Nb, Ct, OH, OW), lambda n, c: (n, c, 0, 0))
    out_struct = jax.ShapeDtypeStruct((N, C, OH, OW), x.dtype)

    kernel = functools.partial(_hybrid_pool_kernel,
                               w_bins=w_bins, h_bins=h_bins, cat=cat)
    cparams = pltpu.CompilerParams(
        dimension_semantics=("parallel", "parallel"),
        vmem_limit_bytes=vmem_limit,
    )

    if cat:
        avg_o, max_o = pl.pallas_call(
            kernel,
            out_shape=(out_struct, out_struct),
            grid_spec=pltpu.PrefetchScalarGridSpec(
                num_scalar_prefetch=0, grid=grid,
                in_specs=[in_spec], out_specs=(out_spec, out_spec)),
            compiler_params=cparams,
        )(x_in)
        # torch.cat([avg, max], dim=1) ordering; tiny pooled tensors only.
        return jnp.concatenate([avg_o, max_o], axis=1)

    out = pl.pallas_call(
        kernel,
        out_shape=out_struct,
        grid_spec=pltpu.PrefetchScalarGridSpec(
            num_scalar_prefetch=0, grid=grid,
            in_specs=[in_spec], out_specs=out_spec),
        compiler_params=cparams,
    )(x_in)
    return out


# --------------------------------------------------------------------------- #
# Pure-JAX reference (PyTorch adaptive-pool bin formula)
# --------------------------------------------------------------------------- #
def _adaptive_pool_ref(x, OH, OW):
    N, C, H, W = x.shape
    avg_rows, max_rows = [], []
    for i in range(OH):
        h0 = (i * H) // OH
        h1 = ((i + 1) * H + OH - 1) // OH
        avg_cols, max_cols = [], []
        for j in range(OW):
            w0 = (j * W) // OW
            w1 = ((j + 1) * W + OW - 1) // OW
            win = x[:, :, h0:h1, w0:w1]
            avg_cols.append(win.mean(axis=(2, 3)))
            max_cols.append(win.max(axis=(2, 3)))
        avg_rows.append(jnp.stack(avg_cols, axis=-1))
        max_rows.append(jnp.stack(max_cols, axis=-1))
    avg = jnp.stack(avg_rows, axis=-2)   # (N, C, OH, OW)
    mx = jnp.stack(max_rows, axis=-2)
    return avg, mx


def _reference(x, output_size, cat=False):
    if isinstance(output_size, int):
        OH = OW = output_size
    else:
        OH, OW = output_size
    avg, mx = _adaptive_pool_ref(x, OH, OW)
    if cat:
        return jnp.concatenate([avg, mx], axis=1)
    return 0.5 * (avg + mx)


if __name__ == "__main__":
    key = jax.random.PRNGKey(0)
    k1, k2 = jax.random.split(key)

    pool = jax.jit(adaptive_hybrid_pool2d, static_argnames=("output_size", "cat"))

    # --- Evenly divisible bins: (2, 4, 16, 16) -> output 4x4 ---
    x = jax.random.normal(k1, (2, 4, 16, 16), dtype=jnp.float32)
    out_avg = jax.block_until_ready(pool(x, output_size=4, cat=False))
    assert out_avg.shape == (2, 4, 4, 4)
    assert jnp.allclose(out_avg, _reference(x, 4, cat=False), atol=1e-5, rtol=1e-5)

    out_cat = jax.block_until_ready(pool(x, output_size=4, cat=True))
    assert out_cat.shape == (2, 8, 4, 4)
    assert jnp.allclose(out_cat, _reference(x, 4, cat=True), atol=1e-5, rtol=1e-5)

    # --- Uneven adaptive bins: (2, 4, 17, 13) -> output (4, 3) ---
    xu = jax.random.normal(k2, (2, 4, 17, 13), dtype=jnp.float32)
    out_u_avg = jax.block_until_ready(pool(xu, output_size=(4, 3), cat=False))
    assert out_u_avg.shape == (2, 4, 4, 3)
    assert jnp.allclose(out_u_avg, _reference(xu, (4, 3), cat=False),
                        atol=1e-5, rtol=1e-5)

    out_u_cat = jax.block_until_ready(pool(xu, output_size=(4, 3), cat=True))
    assert out_u_cat.shape == (2, 8, 4, 3)
    assert jnp.allclose(out_u_cat, _reference(xu, (4, 3), cat=True),
                        atol=1e-5, rtol=1e-5)

    print("KERNEL_OK")
</pallas_src>

<mosaic_0001>
module attributes {stable_mosaic.version = 11 : i64} {
  func.func @_hybrid_pool_kernel(%arg0: i32, %arg1: i32, %arg2: memref<1x4x4x4x16xf32, #tpu.memory_space<vmem>>, %arg3: memref<1x4x4x4xf32, #tpu.memory_space<vmem>>) attributes {dimension_semantics = [#tpu.dimension_semantics<parallel>, #tpu.dimension_semantics<parallel>], iteration_bounds = array<i64: 2, 1>, scalar_prefetch = 0 : i64, scratch_operands = 0 : i64, tpu.core_type = #tpu.core_type<tc>, window_params = [{transform_indices = @transform_0, window_bounds = array<i64: 1, 4, 4, 4, 16>}, {transform_indices = @transform_1, window_bounds = array<i64: 1, 4, 4, 4>}]} {
    %c0 = arith.constant 0 : index
    %c0_0 = arith.constant 0 : index
    %c0_1 = arith.constant 0 : index
    %c0_2 = arith.constant 0 : index
    %c0_3 = arith.constant 0 : index
    %0 = vector.load %arg2[%c0, %c0_0, %c0_1, %c0_2, %c0_3] : memref<1x4x4x4x16xf32, #tpu.memory_space<vmem>>, vector<1x4x4x4x16xf32>
    %cst = arith.constant dense<0.000000e+00> : vector<1x4x4x16xf32>
    %1 = vector.multi_reduction <add>, %0, %cst [3] : vector<1x4x4x4x16xf32> to vector<1x4x4x16xf32>
    %cst_4 = arith.constant dense<0xFF800000> : vector<1x4x4x16xf32>
    %2 = vector.multi_reduction <maximumf>, %0, %cst_4 [3] : vector<1x4x4x4x16xf32> to vector<1x4x4x16xf32>
    %3 = vector.extract_strided_slice %1 {offsets = [0, 0, 0, 0], sizes = [1, 4, 4, 4], strides = [1, 1, 1, 1]} : vector<1x4x4x16xf32> to vector<1x4x4x4xf32>
    %cst_5 = arith.constant dense<0.000000e+00> : vector<1x4x4xf32>
    %4 = vector.multi_reduction <add>, %3, %cst_5 [3] : vector<1x4x4x4xf32> to vector<1x4x4xf32>
    %5 = vector.shape_cast %4 : vector<1x4x4xf32> to vector<1x4x4x1xf32>
    %cst_6 = arith.constant 6.250000e-02 : f32
    %6 = vector.broadcast %cst_6 : f32 to vector<1x4x4x1xf32>
    %7 = arith.mulf %5, %6 : vector<1x4x4x1xf32>
    %8 = vector.extract_strided_slice %2 {offsets = [0, 0, 0, 0], sizes = [1, 4, 4, 4], strides = [1, 1, 1, 1]} : vector<1x4x4x16xf32> to vector<1x4x4x4xf32>
    %cst_7 = arith.constant dense<0xFF800000> : vector<1x4x4xf32>
    %9 = vector.multi_reduction <maximumf>, %8, %cst_7 [3] : vector<1x4x4x4xf32> to vector<1x4x4xf32>
    %10 = vector.shape_cast %9 : vector<1x4x4xf32> to vector<1x4x4x1xf32>
    %11 = arith.addf %7, %10 : vector<1x4x4x1xf32>
    %cst_8 = arith.constant 5.000000e-01 : f32
    %12 = vector.broadcast %cst_8 : f32 to vector<1x4x4x1xf32>
    %13 = arith.mulf %12, %11 : vector<1x4x4x1xf32>
    %c0_9 = arith.constant 0 : index
    %c0_10 = arith.constant 0 : index
    %c0_11 = arith.constant 0 : index
    %c0_12 = arith.constant 0 : index
    %14 = vector.load %arg3[%c0_9, %c0_10, %c0_11, %c0_12] : memref<1x4x4x4xf32, #tpu.memory_space<vmem>>, vector<1x4x4x1xf32>
    tpu.vector_store %arg3[%c0_9, %c0_10, %c0_11, %c0_12], %13 {strides = array<i32>} : memref<1x4x4x4xf32, #tpu.memory_space<vmem>>, vector<1x4x4x1xf32>,
    %15 = vector.extract_strided_slice %1 {offsets = [0, 0, 0, 4], sizes = [1, 4, 4, 4], strides = [1, 1, 1, 1]} : vector<1x4x4x16xf32> to vector<1x4x4x4xf32>
    %cst_13 = arith.constant dense<0.000000e+00> : vector<1x4x4xf32>
    %16 = vector.multi_reduction <add>, %15, %cst_13 [3] : vector<1x4x4x4xf32> to vector<1x4x4xf32>
    %17 = vector.shape_cast %16 : vector<1x4x4xf32> to vector<1x4x4x1xf32>
    %cst_14 = arith.constant 6.250000e-02 : f32
    %18 = vector.broadcast %cst_14 : f32 to vector<1x4x4x1xf32>
    %19 = arith.mulf %17, %18 : vector<1x4x4x1xf32>
    %20 = vector.extract_strided_slice %2 {offsets = [0, 0, 0, 4], sizes = [1, 4, 4, 4], strides = [1, 1, 1, 1]} : vector<1x4x4x16xf32> to vector<1x4x4x4xf32>
    %cst_15 = arith.constant dense<0xFF800000> : vector<1x4x4xf32>
    %21 = vector.multi_reduction <maximumf>, %20, %cst_15 [3] : vector<1x4x4x4xf32> to vector<1x4x4xf32>
    %22 = vector.shape_cast %21 : vector<1x4x4xf32> to vector<1x4x4x1xf32>
    %23 = arith.addf %19, %22 : vector<1x4x4x1xf32>
    %cst_16 = arith.constant 5.000000e-01 : f32
    %24 = vector.broadcast %cst_16 : f32 to vector<1x4x4x1xf32>
    %25 = arith.mulf %24, %23 : vector<1x4x4x1xf32>
    %c0_17 = arith.constant 0 : index
    %c0_18 = arith.constant 0 : index
    %c0_19 = arith.constant 0 : index
    %c1 = arith.constant 1 : index
    %26 = vector.load %arg3[%c0_17, %c0_18, %c0_19, %c1] : memref<1x4x4x4xf32, #tpu.memory_space<vmem>>, vector<1x4x4x1xf32>
    tpu.vector_store %arg3[%c0_17, %c0_18, %c0_19, %c1], %25 {strides = array<i32>} : memref<1x4x4x4xf32, #tpu.memory_space<vmem>>, vector<1x4x4x1xf32>,
    %27 = vector.extract_strided_slice %1 {offsets = [0, 0, 0, 8], sizes = [1, 4, 4, 4], strides = [1, 1, 1, 1]} : vector<1x4x4x16xf32> to vector<1x4x4x4xf32>
    %cst_20 = arith.constant dense<0.000000e+00> : vector<1x4x4xf32>
    %28 = vector.multi_reduction <add>, %27, %cst_20 [3] : vector<1x4x4x4xf32> to vector<1x4x4xf32>
    %29 = vector.shape_cast %28 : vector<1x4x4xf32> to vector<1x4x4x1xf32>
    %cst_21 = arith.constant 6.250000e-02 : f32
    %30 = vector.broadcast %cst_21 : f32 to vector<1x4x4x1xf32>
    %31 = arith.mulf %29, %30 : vector<1x4x4x1xf32>
    %32 = vector.extract_strided_slice %2 {offsets = [0, 0, 0, 8], sizes = [1, 4, 4, 4], strides = [1, 1, 1, 1]} : vector<1x4x4x16xf32> to vector<1x4x4x4xf32>
    %cst_22 = arith.constant dense<0xFF800000> : vector<1x4x4xf32>
    %33 = vector.multi_reduction <maximumf>, %32, %cst_22 [3] : vector<1x4x4x4xf32> to vector<1x4x4xf32>
    %34 = vector.shape_cast %33 : vector<1x4x4xf32> to vector<1x4x4x1xf32>
    %35 = arith.addf %31, %34 : vector<1x4x4x1xf32>
    %cst_23 = arith.constant 5.000000e-01 : f32
    %36 = vector.broadcast %cst_23 : f32 to vector<1x4x4x1xf32>
    %37 = arith.mulf %36, %35 : vector<1x4x4x1xf32>
    %c0_24 = arith.constant 0 : index
    %c0_25 = arith.constant 0 : index
    %c0_26 = arith.constant 0 : index
    %c2 = arith.constant 2 : index
    %38 = vector.load %arg3[%c0_24, %c0_25, %c0_26, %c2] : memref<1x4x4x4xf32, #tpu.memory_space<vmem>>, vector<1x4x4x1xf32>
    tpu.vector_store %arg3[%c0_24, %c0_25, %c0_26, %c2], %37 {strides = array<i32>} : memref<1x4x4x4xf32, #tpu.memory_space<vmem>>, vector<1x4x4x1xf32>,
    %39 = vector.extract_strided_slice %1 {offsets = [0, 0, 0, 12], sizes = [1, 4, 4, 4], strides = [1, 1, 1, 1]} : vector<1x4x4x16xf32> to vector<1x4x4x4xf32>
    %cst_27 = arith.constant dense<0.000000e+00> : vector<1x4x4xf32>
    %40 = vector.multi_reduction <add>, %39, %cst_27 [3] : vector<1x4x4x4xf32> to vector<1x4x4xf32>
    %41 = vector.shape_cast %40 : vector<1x4x4xf32> to vector<1x4x4x1xf32>
    %cst_28 = arith.constant 6.250000e-02 : f32
    %42 = vector.broadcast %cst_28 : f32 to vector<1x4x4x1xf32>
    %43 = arith.mulf %41, %42 : vector<1x4x4x1xf32>
    %44 = vector.extract_strided_slice %2 {offsets = [0, 0, 0, 12], sizes = [1, 4, 4, 4], strides = [1, 1, 1, 1]} : vector<1x4x4x16xf32> to vector<1x4x4x4xf32>
    %cst_29 = arith.constant dense<0xFF800000> : vector<1x4x4xf32>
    %45 = vector.multi_reduction <maximumf>, %44, %cst_29 [3] : vector<1x4x4x4xf32> to vector<1x4x4xf32>
    %46 = vector.shape_cast %45 : vector<1x4x4xf32> to vector<1x4x4x1xf32>
    %47 = arith.addf %43, %46 : vector<1x4x4x1xf32>
    %cst_30 = arith.constant 5.000000e-01 : f32
    %48 = vector.broadcast %cst_30 : f32 to vector<1x4x4x1xf32>
    %49 = arith.mulf %48, %47 : vector<1x4x4x1xf32>
    %c0_31 = arith.constant 0 : index
    %c0_32 = arith.constant 0 : index
    %c0_33 = arith.constant 0 : index
    %c3 = arith.constant 3 : index
    %50 = vector.load %arg3[%c0_31, %c0_32, %c0_33, %c3] : memref<1x4x4x4xf32, #tpu.memory_space<vmem>>, vector<1x4x4x1xf32>
    tpu.vector_store %arg3[%c0_31, %c0_32, %c0_33, %c3], %49 {strides = array<i32>} : memref<1x4x4x4xf32, #tpu.memory_space<vmem>>, vector<1x4x4x1xf32>,
    return
  }
  func.func @transform_0(%arg0: i32, %arg1: i32) -> (i32, i32, i32, i32, i32) {
    %c0_i32 = arith.constant 0 : i32
    %c0_i32_0 = arith.constant 0 : i32
    %c0_i32_1 = arith.constant 0 : i32
    %c0_i32_2 = arith.constant 0 : i32
    return %arg0, %arg1, %c0_i32, %c0_i32_0, %c0_i32_1 : i32, i32, i32, i32, i32
  }
  func.func @transform_1(%arg0: i32, %arg1: i32) -> (i32, i32, i32, i32) {
    %c0_i32 = arith.constant 0 : i32
    %c0_i32_0 = arith.constant 0 : i32
    %c0_i32_1 = arith.constant 0 : i32
    return %arg0, %arg1, %c0_i32, %c0_i32_0 : i32, i32, i32, i32
  }
}

</mosaic_0001>

<llo_original>
// kernel: adaptive_hybrid_pool2d.1
$region0: #{adaptive_hybrid_pool2d.1}
  #allocation0 [shape = 'u32[]', space=smem, size = 0x4, offset = 0x4, fixed_abs, tag = 'smem constant byte address 0x4 - core index']
  #allocation1 [shape = 'u32[144,128]{1,0:T(1,128)}', space=vmem, size = 0x12000, scoped, tag = 'internal scratch']
  %s0 = inlined_call_operand.hbm [shape: f32[2,4,4,4,16], index: 0, kind: input, shape index: {}]
  %s1 = inlined_call_operand.hbm [shape: f32[2,4,4,4], index: 1, kind: output, shape index: {}]
  %s2 = sld [smem:[#allocation0]]
  $region41: #{adaptive_hybrid_pool2d.1} parent=0
    _
  %s4 = ssub.s32 1, %s2
  %s5 = scalar_select 0, %s4, %s2
  $region1: #{adaptive_hybrid_pool2d.1} parent=0
    #allocation2 [shape = 'u8[65536]{0}', space=vmem, size = 0x10000, scoped, tag = 'input window, operand 0']
    #allocation3 [shape = 's32[2]{0}', space=sflag, size = 0x8, scoped, tag = 'scoped memory for adaptive_hybrid_pool2d.1']
    #allocation4 [shape = 's32[2]{0}', space=sflag, size = 0x8, scoped, tag = 'scoped memory for adaptive_hybrid_pool2d.1']
    #allocation5 [shape = 'u8[16384]{0}', space=vmem, size = 0x4000, scoped, tag = 'output window, operand 0']
    %6 = vsyncpa [#allocation3], 0
    %s7 = scalar_lea.sflag [#allocation3], 1
    %8 = vsyncpa %s7, 0
    %9 = vsyncpa [#allocation4], 0
    %s10 = scalar_lea.sflag [#allocation4], 1
    %11 = vsyncpa %s10, 0
    loop: start=0, step=1, limit=4
    $region2: #{adaptive_hybrid_pool2d.1} parent=1 // loop_pre_header
      _
    $region3: #{adaptive_hybrid_pool2d.1} parent=1 // loop_header
      %s13 = sphi 0, %s17
      %p14 = scmp.ge.s32.totalorder %s13, 4
      %s20 = sphi 0, %s32
      %s21 = sphi 0, %s28
      %s22 = sphi 0, %s20
      %s23 = sphi 0, %s21
      %s24 = sphi 0, %s22
      %s25 = sphi 0, %s23
      %s37 = sphi 0, %s39
      %s40 = sphi 0, %s37
      %s41 = sphi 0, %s40
      %s57 = sphi 0, %s41
      %s65 = sphi 0, %s67
      %s68 = sphi 0, %s65
      %s69 = sphi 0, %s68
      %s85 = sphi 0, %s69
    $region4: #{adaptive_hybrid_pool2d.1} parent=1 // loop_header_branch
      %16 = sbr.rel (%p14) target = $region8
    $region5: #{adaptive_hybrid_pool2d.1} parent=1 // loop_body
      %s18 = ssub.s32 %s13, 1
      %s19 = ssub.s32 %s13, 2
      %s26 = sadd.s32 1, %s21
      %p27 = scmp.ge.s32.totalorder %s26, 1
      %s28 = scalar_select %p27, 0, %s26
      %s29 = sadd.s32 1, %s20
      %s30 = scalar_select %p27, %s29, %s20
      %p31 = scmp.ge.s32.totalorder %s30, 2
      %s32 = scalar_select %p31, 0, %s30
      %s33 = ssub.s32 %s20, %s32
      %s34 = ssub.s32 %s21, %s28
      %s35 = sor.u32 %s33, %s34
      %p36 = scmp.eq.s32.totalorder %s35, 0
      %s38 = sadd.s32 %s37, 1
      %s39 = scalar_select %p36, %s37, %s38
      %p42 = pneg %p36
      %p43 = scmp.eq.s32.totalorder %s13, 1
      %p44 = por %p42, %p43
      %p45 = scmp.ne.s32.totalorder %s37, %s40
      %p46 = scmp.eq.s32.totalorder %s13, 0
      %p47 = por %p45, %p46
      %p48 = scmp.ne.s32.totalorder %s37, %s40
      %p49 = scmp.eq.s32.totalorder %s18, 1
      %p50 = por %p48, %p49
      %p51 = scmp.ne.s32.totalorder %s40, %s41
      %p52 = scmp.eq.s32.totalorder %s18, 0
      %p53 = por %p51, %p52
      %p54 = scmp.ne.s32.totalorder %s40, %s41
      %p55 = scmp.eq.s32.totalorder %s19, 1
      %p56 = por %p54, %p55
      %p58 = scmp.ne.s32.totalorder %s41, %s57
      %p59 = scmp.eq.s32.totalorder %s19, 0
      %p60 = por %p58, %p59
      %s61 = ssub.s32 %s20, %s32
      %s62 = ssub.s32 %s21, %s28
      %s63 = sor.u32 %s61, %s62
      %p64 = scmp.eq.s32.totalorder %s63, 0
      %s66 = sadd.s32 %s65, 1
      %s67 = scalar_select %p64, %s65, %s66
      %p70 = pneg %p64
      %p71 = scmp.eq.s32.totalorder %s13, 1
      %p72 = por %p70, %p71
      %p73 = scmp.ne.s32.totalorder %s65, %s68
      %p74 = scmp.eq.s32.totalorder %s13, 0
      %p75 = por %p73, %p74
      %p76 = scmp.ne.s32.totalorder %s65, %s68
      %p77 = scmp.eq.s32.totalorder %s18, 1
      %p78 = por %p76, %p77
      %p79 = scmp.ne.s32.totalorder %s68, %s69
      %p80 = scmp.eq.s32.totalorder %s18, 0
      %p81 = por %p79, %p80
      %p82 = scmp.ne.s32.totalorder %s68, %s69
      %p83 = scmp.eq.s32.totalorder %s19, 1
      %p84 = por %p82, %p83
      %p86 = scmp.ne.s32.totalorder %s69, %s85
      %p87 = scmp.eq.s32.totalorder %s19, 0
      %p88 = por %p86, %p87
      %p89 = scmp.le.s32.totalorder 1, %s13
      %p90 = scmp.lt.s32.totalorder %s13, 3
      %p91 = pnand %p89, %p90
      %p92 = pneg %p91
      // Predicated region
      $region9: #{adaptive_hybrid_pool2d.1} parent=5 // pred_check
        _
      $region10: #{adaptive_hybrid_pool2d.1} parent=5 // pred_check_branch
        %94 = sbr.rel (%p91) target = $region12
      $region11: #{adaptive_hybrid_pool2d.1} parent=5 // pred_region
        %s95 = ssub.s32 %s13, 1
      $region12: #{adaptive_hybrid_pool2d.1} parent=5 // pred_fallthru
        _
      %p96 = scmp.lt.s32.totalorder %s13, 2
      // Predicated region
      $region13: #{adaptive_hybrid_pool2d.1} parent=5 // pred_check
        %p97 = pneg %p96
      $region14: #{adaptive_hybrid_pool2d.1} parent=5 // pred_check_branch
        %99 = sbr.rel (%p97) target = $region16
      $region15: #{adaptive_hybrid_pool2d.1} parent=5 // pred_region
        // Predicated region
        $region17: #{adaptive_hybrid_pool2d.1} parent=15 // pred_check
          %p100 = pneg %p47
        $region18: #{adaptive_hybrid_pool2d.1} parent=15 // pred_check_branch
          %102 = sbr.rel (%p100) target = $region20
        $region19: #{adaptive_hybrid_pool2d.1} parent=15 // pred_region
          %s103 = sand.u32 %s37, 1
          %s104 = scalar_lea.sflag [#allocation3], %s103
          %s105 = sand.u32 %s37, 1
          %s106 = smul.addr %s105, 64
          %s107 = scalar_lea.vmem [#allocation2], %s106
          %s108 = smul.u32 4, %s21
          %s110 = ssub.s32 1024, 1024
          %111 = vsyncadd %s104, %s110
          %s112 = smul.addr %s108, 4
          %s113 = smul.addr %s20, 16
          %s114 = sadd.s32 %s112, %s113
          %s115 = smul.addr %s114, 64
          %s116 = scalar_lea.hbm %s0, %s115
          %s117 = sshll.u32 %s107, 4
          %s118 = int_to_ptr.vmem [resolvable:$true] %s117
          %123 = dma.hbm_to_vmem [thread:$0]  %s116, 1024, %s118, %s104, 64, 64, 4
        $region20: #{adaptive_hybrid_pool2d.1} parent=15 // pred_fallthru
          _
      $region16: #{adaptive_hybrid_pool2d.1} parent=5 // pred_fallthru
        _
      %p124 = scmp.le.s32.totalorder 1, %s13
      %p125 = scmp.lt.s32.totalorder %s13, 3
      %p126 = pnand %p124, %p125
      %p127 = pneg %p126
      // Predicated region
      $region21: #{adaptive_hybrid_pool2d.1} parent=5 // pred_check
        _
      $region22: #{adaptive_hybrid_pool2d.1} parent=5 // pred_check_branch
        %129 = sbr.rel (%p126) target = $region24
      $region23: #{adaptive_hybrid_pool2d.1} parent=5 // pred_region
        %s130 = ssub.s32 %s13, 1
        %s131 = sand.u32 %s40, 1
        %s132 = scalar_lea.sflag [#allocation3], %s131
        %s133 = sand.u32 %s40, 1
        %s134 = smul.addr %s133, 64
        %s135 = scalar_lea.vmem [#allocation2], %s134
        // Predicated region
        $region25: #{adaptive_hybrid_pool2d.1} parent=23 // pred_check
          %p136 = pneg %p53
        $region26: #{adaptive_hybrid_pool2d.1} parent=23 // pred_check_branch
          %138 = sbr.rel (%p136) target = $region28
        $region27: #{adaptive_hybrid_pool2d.1} parent=23 // pred_region
          %139 = dma.done %s132, 1024
        $region28: #{adaptive_hybrid_pool2d.1} parent=23 // pred_fallthru
          _
        %s140 = sand.u32 %s40, 1
        %s141 = scalar_lea.sflag [#allocation3], %s140
        %s142 = sand.u32 %s40, 1
        %s143 = smul.addr %s142, 64
        %s144 = scalar_lea.vmem [#allocation2], %s143
        %p145 = pneg %p53
        %p146 = pneg %p50
        %p147 = pneg %p81
        %p148 = pneg %p78
        %s149 = sand.u32 %s68, 1
        %s150 = scalar_lea.sflag [#allocation4], %s149
        %s151 = sand.u32 %s68, 1
        %s152 = smul.addr %s151, 16
        %s153 = scalar_lea.vmem [#allocation5], %s152
        %s154 = smul.u32 4, %s23
        %s155 = smul.u32 4, %s23
        %v156 = vld [vmem:[%s135] sm:$0xf]
        %v157 = vld [vmem:[%s135 + $0x4] sm:$0xf]
        %v158 = vld [vmem:[%s135 + $0x8] sm:$0xf]
        %v159 = vld [vmem:[%s135 + $0xc] sm:$0xf]
        %v160 = vld [vmem:[%s135 + $0x10] sm:$0xf]
        %v161 = vld [vmem:[%s135 + $0x14] sm:$0xf]
        %v162 = vld [vmem:[%s135 + $0x18] sm:$0xf]
        %v163 = vld [vmem:[%s135 + $0x1c] sm:$0xf]
        %v164 = vld [vmem:[%s135 + $0x20] sm:$0xf]
        %v165 = vld [vmem:[%s135 + $0x24] sm:$0xf]
        %v166 = vld [vmem:[%s135 + $0x28] sm:$0xf]
        %v167 = vld [vmem:[%s135 + $0x2c] sm:$0xf]
        %v168 = vld [vmem:[%s135 + $0x30] sm:$0xf]
        %v169 = vld [vmem:[%s135 + $0x34] sm:$0xf]
        %v170 = vld [vmem:[%s135 + $0x38] sm:$0xf]
        %v171 = vld [vmem:[%s135 + $0x3c] sm:$0xf]
        %vm172 = vcmask 125952
        %v173 = vsel %vm172, %v156, 0.0
        %v174 = vrot.slane %v173, 4
        %v175 = vadd.f32 %v173, %v174
        %v176 = vrot.slane %v175, 2
        %v177 = vadd.f32 %v175, %v176
        %v178 = vrot.slane %v177, 1
        %v179 = vadd.f32 %v177, %v178
        %v180 = vsel %vm172, %v157, 0.0
        %v181 = vrot.slane %v180, 4
        %v182 = vadd.f32 %v180, %v181
        %v183 = vrot.slane %v182, 2
        %v184 = vadd.f32 %v182, %v183
        %v185 = vrot.slane %v184, 1
        %v186 = vadd.f32 %v184, %v185
        %v187 = vsel %vm172, %v158, 0.0
        %v188 = vrot.slane %v187, 4
        %v189 = vadd.f32 %v187, %v188
        %v190 = vrot.slane %v189, 2
        %v191 = vadd.f32 %v189, %v190
        %v192 = vrot.slane %v191, 1
        %v193 = vadd.f32 %v191, %v192
        %v194 = vsel %vm172, %v159, 0.0
        %v195 = vrot.slane %v194, 4
        %v196 = vadd.f32 %v194, %v195
        %v197 = vrot.slane %v196, 2
        %v198 = vadd.f32 %v196, %v197
        %v199 = vrot.slane %v198, 1
        %v200 = vadd.f32 %v198, %v199
        %v201 = vsel %vm172, %v160, 0.0
        %v202 = vrot.slane %v201, 4
        %v203 = vadd.f32 %v201, %v202
        %v204 = vrot.slane %v203, 2
        %v205 = vadd.f32 %v203, %v204
        %v206 = vrot.slane %v205, 1
        %v207 = vadd.f32 %v205, %v206
        %v208 = vsel %vm172, %v161, 0.0
        %v209 = vrot.slane %v208, 4
        %v210 = vadd.f32 %v208, %v209
        %v211 = vrot.slane %v210, 2
        %v212 = vadd.f32 %v210, %v211
        %v213 = vrot.slane %v212, 1
        %v214 = vadd.f32 %v212, %v213
        %v215 = vsel %vm172, %v162, 0.0
        %v216 = vrot.slane %v215, 4
        %v217 = vadd.f32 %v215, %v216
        %v218 = vrot.slane %v217, 2
        %v219 = vadd.f32 %v217, %v218
        %v220 = vrot.slane %v219, 1
        %v221 = vadd.f32 %v219, %v220
        %v222 = vsel %vm172, %v163, 0.0
        %v223 = vrot.slane %v222, 4
        %v224 = vadd.f32 %v222, %v223
        %v225 = vrot.slane %v224, 2
        %v226 = vadd.f32 %v224, %v225
        %v227 = vrot.slane %v226, 1
        %v228 = vadd.f32 %v226, %v227
        %v229 = vsel %vm172, %v164, 0.0
        %v230 = vrot.slane %v229, 4
        %v231 = vadd.f32 %v229, %v230
        %v232 = vrot.slane %v231, 2
        %v233 = vadd.f32 %v231, %v232
        %v234 = vrot.slane %v233, 1
        %v235 = vadd.f32 %v233, %v234
        %v236 = vsel %vm172, %v165, 0.0
        %v237 = vrot.slane %v236, 4
        %v238 = vadd.f32 %v236, %v237
        %v239 = vrot.slane %v238, 2
        %v240 = vadd.f32 %v238, %v239
        %v241 = vrot.slane %v240, 1
        %v242 = vadd.f32 %v240, %v241
        %v243 = vsel %vm172, %v166, 0.0
        %v244 = vrot.slane %v243, 4
        %v245 = vadd.f32 %v243, %v244
        %v246 = vrot.slane %v245, 2
        %v247 = vadd.f32 %v245, %v246
        %v248 = vrot.slane %v247, 1
        %v249 = vadd.f32 %v247, %v248
        %v250 = vsel %vm172, %v167, 0.0
        %v251 = vrot.slane %v250, 4
        %v252 = vadd.f32 %v250, %v251
        %v253 = vrot.slane %v252, 2
        %v254 = vadd.f32 %v252, %v253
        %v255 = vrot.slane %v254, 1
        %v256 = vadd.f32 %v254, %v255
        %v257 = vsel %vm172, %v168, 0.0
        %v258 = vrot.slane %v257, 4
        %v259 = vadd.f32 %v257, %v258
        %v260 = vrot.slane %v259, 2
        %v261 = vadd.f32 %v259, %v260
        %v262 = vrot.slane %v261, 1
        %v263 = vadd.f32 %v261, %v262
        %v264 = vsel %vm172, %v169, 0.0
        %v265 = vrot.slane %v264, 4
        %v266 = vadd.f32 %v264, %v265
        %v267 = vrot.slane %v266, 2
        %v268 = vadd.f32 %v266, %v267
        %v269 = vrot.slane %v268, 1
        %v270 = vadd.f32 %v268, %v269
        %v271 = vsel %vm172, %v170, 0.0
        %v272 = vrot.slane %v271, 4
        %v273 = vadd.f32 %v271, %v272
        %v274 = vrot.slane %v273, 2
        %v275 = vadd.f32 %v273, %v274
        %v276 = vrot.slane %v275, 1
        %v277 = vadd.f32 %v275, %v276
        %v278 = vsel %vm172, %v171, 0.0
        %v279 = vrot.slane %v278, 4
        %v280 = vadd.f32 %v278, %v279
        %v281 = vrot.slane %v280, 2
        %v282 = vadd.f32 %v280, %v281
        %v283 = vrot.slane %v282, 1
        %v284 = vadd.f32 %v282, %v283
        %v285 = vsel %vm172, %v156, -inf
        %v286 = vrot.slane %v285, 4
        %v287 = vmax.f32 %v285, %v286
        %v288 = vrot.slane %v287, 2
        %v289 = vmax.f32 %v287, %v288
        %v290 = vrot.slane %v289, 1
        %v291 = vmax.f32 %v289, %v290
        %v292 = vsel %vm172, %v157, -inf
        %v293 = vrot.slane %v292, 4
        %v294 = vmax.f32 %v292, %v293
        %v295 = vrot.slane %v294, 2
        %v296 = vmax.f32 %v294, %v295
        %v297 = vrot.slane %v296, 1
        %v298 = vmax.f32 %v296, %v297
        %v299 = vsel %vm172, %v158, -inf
        %v300 = vrot.slane %v299, 4
        %v301 = vmax.f32 %v299, %v300
        %v302 = vrot.slane %v301, 2
        %v303 = vmax.f32 %v301, %v302
        %v304 = vrot.slane %v303, 1
        %v305 = vmax.f32 %v303, %v304
        %v306 = vsel %vm172, %v159, -inf
        %v307 = vrot.slane %v306, 4
        %v308 = vmax.f32 %v306, %v307
        %v309 = vrot.slane %v308, 2
        %v310 = vmax.f32 %v308, %v309
        %v311 = vrot.slane %v310, 1
        %v312 = vmax.f32 %v310, %v311
        %v313 = vsel %vm172, %v160, -inf
        %v314 = vrot.slane %v313, 4
        %v315 = vmax.f32 %v313, %v314
        %v316 = vrot.slane %v315, 2
        %v317 = vmax.f32 %v315, %v316
        %v318 = vrot.slane %v317, 1
        %v319 = vmax.f32 %v317, %v318
        %v320 = vsel %vm172, %v161, -inf
        %v321 = vrot.slane %v320, 4
        %v322 = vmax.f32 %v320, %v321
        %v323 = vrot.slane %v322, 2
        %v324 = vmax.f32 %v322, %v323
        %v325 = vrot.slane %v324, 1
        %v326 = vmax.f32 %v324, %v325
        %v327 = vsel %vm172, %v162, -inf
        %v328 = vrot.slane %v327, 4
        %v329 = vmax.f32 %v327, %v328
        %v330 = vrot.slane %v329, 2
        %v331 = vmax.f32 %v329, %v330
        %v332 = vrot.slane %v331, 1
        %v333 = vmax.f32 %v331, %v332
        %v334 = vsel %vm172, %v163, -inf
        %v335 = vrot.slane %v334, 4
        %v336 = vmax.f32 %v334, %v335
        %v337 = vrot.slane %v336, 2
        %v338 = vmax.f32 %v336, %v337
        %v339 = vrot.slane %v338, 1
        %v340 = vmax.f32 %v338, %v339
        %v341 = vsel %vm172, %v164, -inf
        %v342 = vrot.slane %v341, 4
        %v343 = vmax.f32 %v341, %v342
        %v344 = vrot.slane %v343, 2
        %v345 = vmax.f32 %v343, %v344
        %v346 = vrot.slane %v345, 1
        %v347 = vmax.f32 %v345, %v346
        %v348 = vsel %vm172, %v165, -inf
        %v349 = vrot.slane %v348, 4
        %v350 = vmax.f32 %v348, %v349
        %v351 = vrot.slane %v350, 2
        %v352 = vmax.f32 %v350, %v351
        %v353 = vrot.slane %v352, 1
        %v354 = vmax.f32 %v352, %v353
        %v355 = vsel %vm172, %v166, -inf
        %v356 = vrot.slane %v355, 4
        %v357 = vmax.f32 %v355, %v356
        %v358 = vrot.slane %v357, 2
        %v359 = vmax.f32 %v357, %v358
        %v360 = vrot.slane %v359, 1
        %v361 = vmax.f32 %v359, %v360
        %v362 = vsel %vm172, %v167, -inf
        %v363 = vrot.slane %v362, 4
        %v364 = vmax.f32 %v362, %v363
        %v365 = vrot.slane %v364, 2
        %v366 = vmax.f32 %v364, %v365
        %v367 = vrot.slane %v366, 1
        %v368 = vmax.f32 %v366, %v367
        %v369 = vsel %vm172, %v168, -inf
        %v370 = vrot.slane %v369, 4
        %v371 = vmax.f32 %v369, %v370
        %v372 = vrot.slane %v371, 2
        %v373 = vmax.f32 %v371, %v372
        %v374 = vrot.slane %v373, 1
        %v375 = vmax.f32 %v373, %v374
        %v376 = vsel %vm172, %v169, -inf
        %v377 = vrot.slane %v376, 4
        %v378 = vmax.f32 %v376, %v377
        %v379 = vrot.slane %v378, 2
        %v380 = vmax.f32 %v378, %v379
        %v381 = vrot.slane %v380, 1
        %v382 = vmax.f32 %v380, %v381
        %v383 = vsel %vm172, %v170, -inf
        %v384 = vrot.slane %v383, 4
        %v385 = vmax.f32 %v383, %v384
        %v386 = vrot.slane %v385, 2
        %v387 = vmax.f32 %v385, %v386
        %v388 = vrot.slane %v387, 1
        %v389 = vmax.f32 %v387, %v388
        %v390 = vsel %vm172, %v171, -inf
        %v391 = vrot.slane %v390, 4
        %v392 = vmax.f32 %v390, %v391
        %v393 = vrot.slane %v392, 2
        %v394 = vmax.f32 %v392, %v393
        %v395 = vrot.slane %v394, 1
        %v396 = vmax.f32 %v394, %v395
        %vm413 = vcmask 1041409
        %v414 = vsel %vm413, %v186, %v179
        %vm415 = vcmask 1042434
        %v416 = vsel %vm415, %v193, %v414
        %vm417 = vcmask 1043459
        %v418 = vsel %vm417, %v200, %v416
        %v419 = vsel %vm413, %v214, %v207
        %v420 = vsel %vm415, %v221, %v419
        %v421 = vsel %vm417, %v228, %v420
        %v422 = vsel %vm413, %v242, %v235
        %v423 = vsel %vm415, %v249, %v422
        %v424 = vsel %vm417, %v256, %v423
        %v425 = vsel %vm413, %v270, %v263
        %v426 = vsel %vm415, %v277, %v425
        %v427 = vsel %vm417, %v284, %v426
        %vm432 = vcmask 27648
        %v433 = vsel %vm432, %v418, 0.0
        %434 = vadd.xlane.f32.xlu0 %v433
        %v435 = vpop.xlane.xlu0 %434
        %v436 = vsel %vm432, %v421, 0.0
        %437 = vadd.xlane.f32.xlu0 %v436
        %v438 = vpop.xlane.xlu0 %437
        %v439 = vsel %vm432, %v424, 0.0
        %440 = vadd.xlane.f32.xlu0 %v439
        %v441 = vpop.xlane.xlu0 %440
        %v442 = vsel %vm432, %v427, 0.0
        %443 = vadd.xlane.f32.xlu0 %v442
        %v444 = vpop.xlane.xlu0 %443
        %v445 = vmul.f32 %v435, 0.0625
        %v446 = vmul.f32 %v438, 0.0625
        %v447 = vmul.f32 %v441, 0.0625
        %v448 = vmul.f32 %v444, 0.0625
        %v465 = vsel %vm413, %v298, %v291
        %v466 = vsel %vm415, %v305, %v465
        %v467 = vsel %vm417, %v312, %v466
        %v468 = vsel %vm413, %v326, %v319
        %v469 = vsel %vm415, %v333, %v468
        %v470 = vsel %vm417, %v340, %v469
        %v471 = vsel %vm413, %v354, %v347
        %v472 = vsel %vm415, %v361, %v471
        %v473 = vsel %vm417, %v368, %v472
        %v474 = vsel %vm413, %v382, %v375
        %v475 = vsel %vm415, %v389, %v474
        %v476 = vsel %vm417, %v396, %v475
        %v481 = vsel %vm432, %v467, -inf
        %482 = vmax.xlane.f32.xlu0 %v481
        %v483 = vpop.xlane.xlu0 %482
        %v484 = vsel %vm432, %v470, -inf
        %485 = vmax.xlane.f32.xlu0 %v484
        %v486 = vpop.xlane.xlu0 %485
        %v487 = vsel %vm432, %v473, -inf
        %488 = vmax.xlane.f32.xlu0 %v487
        %v489 = vpop.xlane.xlu0 %488
        %v490 = vsel %vm432, %v476, -inf
        %491 = vmax.xlane.f32.xlu0 %v490
        %v492 = vpop.xlane.xlu0 %491
        %v493 = vadd.f32 %v445, %v483
        %v494 = vadd.f32 %v446, %v486
        %v495 = vadd.f32 %v447, %v489
        %v496 = vadd.f32 %v448, %v492
        %v497 = vmul.f32 %v493, 0.5
        %v498 = vmul.f32 %v494, 0.5
        %v499 = vmul.f32 %v495, 0.5
        %v500 = vmul.f32 %v496, 0.5
        %vm501 = vcmask 3072
        %502 = vst.msk [vmem:[%s153] sm:$0xf] %vm501, %v497
        %503 = vst.msk [vmem:[%s153 + $0x4] sm:$0xf] %vm501, %v498
        %504 = vst.msk [vmem:[%s153 + $0x8] sm:$0xf] %vm501, %v499
        %505 = vst.msk [vmem:[%s153 + $0xc] sm:$0xf] %vm501, %v500
        %506 = vrot.lane.b32.xlu0 %v418, 124
        %v507 = vpop.permute.xlu0 %506
        %508 = vrot.lane.b32.xlu0 %v421, 124
        %v509 = vpop.permute.xlu0 %508
        %510 = vrot.lane.b32.xlu0 %v424, 124
        %v511 = vpop.permute.xlu0 %510
        %512 = vrot.lane.b32.xlu0 %v427, 124
        %v513 = vpop.permute.xlu0 %512
        %v518 = vsel %vm432, %v507, 0.0
        %519 = vadd.xlane.f32.xlu0 %v518
        %v520 = vpop.xlane.xlu0 %519
        %v521 = vsel %vm432, %v509, 0.0
        %522 = vadd.xlane.f32.xlu0 %v521
        %v523 = vpop.xlane.xlu0 %522
        %v524 = vsel %vm432, %v511, 0.0
        %525 = vadd.xlane.f32.xlu0 %v524
        %v526 = vpop.xlane.xlu0 %525
        %v527 = vsel %vm432, %v513, 0.0
        %528 = vadd.xlane.f32.xlu0 %v527
        %v529 = vpop.xlane.xlu0 %528
        %v530 = vmul.f32 %v520, 0.0625
        %v531 = vmul.f32 %v523, 0.0625
        %v532 = vmul.f32 %v526, 0.0625
        %v533 = vmul.f32 %v529, 0.0625
        %vm534 = vcmask 60448
        %v535 = vsel %vm534, %v467, -inf
        %536 = vmax.xlane.f32.xlu0 %v535
        %v537 = vpop.xlane.xlu0 %536
        %v538 = vsel %vm534, %v470, -inf
        %539 = vmax.xlane.f32.xlu0 %v538
        %v540 = vpop.xlane.xlu0 %539
        %v541 = vsel %vm534, %v473, -inf
        %542 = vmax.xlane.f32.xlu0 %v541
        %v543 = vpop.xlane.xlu0 %542
        %v544 = vsel %vm534, %v476, -inf
        %545 = vmax.xlane.f32.xlu0 %v544
        %v546 = vpop.xlane.xlu0 %545
        %v547 = vadd.f32 %v530, %v537
        %v548 = vadd.f32 %v531, %v540
        %v549 = vadd.f32 %v532, %v543
        %v550 = vadd.f32 %v533, %v546
        %v551 = vmul.f32 %v547, 0.5
        %v552 = vmul.f32 %v548, 0.5
        %v553 = vmul.f32 %v549, 0.5
        %v554 = vmul.f32 %v550, 0.5
        %vm555 = vcmask 11272
        %556 = vst.msk [vmem:[%s153] sm:$0xf] %vm555, %v551
        %557 = vst.msk [vmem:[%s153 + $0x4] sm:$0xf] %vm555, %v552
        %558 = vst.msk [vmem:[%s153 + $0x8] sm:$0xf] %vm555, %v553
        %559 = vst.msk [vmem:[%s153 + $0xc] sm:$0xf] %vm555, %v554
        %560 = vrot.lane.b32.xlu0 %v418, 120
        %v561 = vpop.permute.xlu0 %560
        %562 = vrot.lane.b32.xlu0 %v421, 120
        %v563 = vpop.permute.xlu0 %562
        %564 = vrot.lane.b32.xlu0 %v424, 120
        %v565 = vpop.permute.xlu0 %564
        %566 = vrot.lane.b32.xlu0 %v427, 120
        %v567 = vpop.permute.xlu0 %566
        %v572 = vsel %vm432, %v561, 0.0
        %573 = vadd.xlane.f32.xlu0 %v572
        %v574 = vpop.xlane.xlu0 %573
        %v575 = vsel %vm432, %v563, 0.0
        %576 = vadd.xlane.f32.xlu0 %v575
        %v577 = vpop.xlane.xlu0 %576
        %v578 = vsel %vm432, %v565, 0.0
        %579 = vadd.xlane.f32.xlu0 %v578
        %v580 = vpop.xlane.xlu0 %579
        %v581 = vsel %vm432, %v567, 0.0
        %582 = vadd.xlane.f32.xlu0 %v581
        %v583 = vpop.xlane.xlu0 %582
        %v584 = vmul.f32 %v574, 0.0625
        %v585 = vmul.f32 %v577, 0.0625
        %v586 = vmul.f32 %v580, 0.0625
        %v587 = vmul.f32 %v583, 0.0625
        %vm588 = vcmask 93248
        %v589 = vsel %vm588, %v467, -inf
        %590 = vmax.xlane.f32.xlu0 %v589
        %v591 = vpop.xlane.xlu0 %590
        %v592 = vsel %vm588, %v470, -inf
        %593 = vmax.xlane.f32.xlu0 %v592
        %v594 = vpop.xlane.xlu0 %593
        %v595 = vsel %vm588, %v473, -inf
        %596 = vmax.xlane.f32.xlu0 %v595
        %v597 = vpop.xlane.xlu0 %596
        %v598 = vsel %vm588, %v476, -inf
        %599 = vmax.xlane.f32.xlu0 %v598
        %v600 = vpop.xlane.xlu0 %599
        %v601 = vadd.f32 %v584, %v591
        %v602 = vadd.f32 %v585, %v594
        %v603 = vadd.f32 %v586, %v597
        %v604 = vadd.f32 %v587, %v600
        %v605 = vmul.f32 %v601, 0.5
        %v606 = vmul.f32 %v602, 0.5
        %v607 = vmul.f32 %v603, 0.5
        %v608 = vmul.f32 %v604, 0.5
        %vm609 = vcmask 19472
        %610 = vst.msk [vmem:[%s153] sm:$0xf] %vm609, %v605
        %611 = vst.msk [vmem:[%s153 + $0x4] sm:$0xf] %vm609, %v606
        %612 = vst.msk [vmem:[%s153 + $0x8] sm:$0xf] %vm609, %v607
        %613 = vst.msk [vmem:[%s153 + $0xc] sm:$0xf] %vm609, %v608
        %614 = vrot.lane.b32.xlu0 %v418, 116
        %v615 = vpop.permute.xlu0 %614
        %616 = vrot.lane.b32.xlu0 %v421, 116
        %v617 = vpop.permute.xlu0 %616
        %618 = vrot.lane.b32.xlu0 %v424, 116
        %v619 = vpop.permute.xlu0 %618
        %620 = vrot.lane.b32.xlu0 %v427, 116
        %v621 = vpop.permute.xlu0 %620
        %v626 = vsel %vm432, %v615, 0.0
        %627 = vadd.xlane.f32.xlu0 %v626
        %v628 = vpop.xlane.xlu0 %627
        %v629 = vsel %vm432, %v617, 0.0
        %630 = vadd.xlane.f32.xlu0 %v629
        %v631 = vpop.xlane.xlu0 %630
        %v632 = vsel %vm432, %v619, 0.0
        %633 = vadd.xlane.f32.xlu0 %v632
        %v634 = vpop.xlane.xlu0 %633
        %v635 = vsel %vm432, %v621, 0.0
        %636 = vadd.xlane.f32.xlu0 %v635
        %v637 = vpop.xlane.xlu0 %636
        %v638 = vmul.f32 %v628, 0.0625
        %v639 = vmul.f32 %v631, 0.0625
        %v640 = vmul.f32 %v634, 0.0625
        %v641 = vmul.f32 %v637, 0.0625
        %vm642 = vcmask 126048
        %v643 = vsel %vm642, %v467, -inf
        %644 = vmax.xlane.f32.xlu0 %v643
        %v645 = vpop.xlane.xlu0 %644
        %v646 = vsel %vm642, %v470, -inf
        %647 = vmax.xlane.f32.xlu0 %v646
        %v648 = vpop.xlane.xlu0 %647
        %v649 = vsel %vm642, %v473, -inf
        %650 = vmax.xlane.f32.xlu0 %v649
        %v651 = vpop.xlane.xlu0 %650
        %v652 = vsel %vm642, %v476, -inf
        %653 = vmax.xlane.f32.xlu0 %v652
        %v654 = vpop.xlane.xlu0 %653
        %v655 = vadd.f32 %v638, %v645
        %v656 = vadd.f32 %v639, %v648
        %v657 = vadd.f32 %v640, %v651
        %v658 = vadd.f32 %v641, %v654
        %v659 = vmul.f32 %v655, 0.5
        %v660 = vmul.f32 %v656, 0.5
        %v661 = vmul.f32 %v657, 0.5
        %v662 = vmul.f32 %v658, 0.5
        %vm663 = vcmask 27672
        %664 = vst.msk [vmem:[%s153] sm:$0xf] %vm663, %v659
        %665 = vst.msk [vmem:[%s153 + $0x4] sm:$0xf] %vm663, %v660
        %666 = vst.msk [vmem:[%s153 + $0x8] sm:$0xf] %vm663, %v661
        %667 = vst.msk [vmem:[%s153 + $0xc] sm:$0xf] %vm663, %v662
        %s668 = sand.u32 %s68, 1
        %s669 = scalar_lea.sflag [#allocation4], %s668
        %s670 = sand.u32 %s68, 1
        %s671 = smul.addr %s670, 16
        %s672 = scalar_lea.vmem [#allocation5], %s671
        // Predicated region
        $region29: #{adaptive_hybrid_pool2d.1} parent=23 // pred_check
          %p673 = pneg %p78
        $region30: #{adaptive_hybrid_pool2d.1} parent=23 // pred_check_branch
          %675 = sbr.rel (%p673) target = $region32
        $region31: #{adaptive_hybrid_pool2d.1} parent=23 // pred_region
          %s676 = smul.u32 4, %s23
          %s678 = ssub.s32 256, 256
          %679 = vsyncadd %s669, %s678
          %s680 = smul.addr %s22, 4
          %s681 = sadd.s32 %s676, %s680
          %s682 = smul.addr %s681, 64
          %s683 = scalar_lea.hbm %s1, %s682
          %s684 = sshll.u32 %s672, 4
          %s685 = int_to_ptr.vmem [resolvable:$true] %s684
          %690 = dma.vmem_to_hbm [thread:$0]  %s685, 256, %s683, %s669, 64, 64, 4
        $region32: #{adaptive_hybrid_pool2d.1} parent=23 // pred_fallthru
          _
      $region24: #{adaptive_hybrid_pool2d.1} parent=5 // pred_fallthru
        _
      %p691 = scmp.le.s32.totalorder 2, %s13
      // Predicated region
      $region33: #{adaptive_hybrid_pool2d.1} parent=5 // pred_check
        %p692 = pneg %p691
      $region34: #{adaptive_hybrid_pool2d.1} parent=5 // pred_check_branch
        %694 = sbr.rel (%p692) target = $region36
      $region35: #{adaptive_hybrid_pool2d.1} parent=5 // pred_region
        %s695 = ssub.s32 %s13, 2
        // Predicated region
        $region37: #{adaptive_hybrid_pool2d.1} parent=35 // pred_check
          %p696 = pneg %p84
        $region38: #{adaptive_hybrid_pool2d.1} parent=35 // pred_check_branch
          %698 = sbr.rel (%p696) target = $region40
        $region39: #{adaptive_hybrid_pool2d.1} parent=35 // pred_region
          %s699 = sand.u32 %s69, 1
          %s700 = scalar_lea.sflag [#allocation4], %s699
          %s701 = sand.u32 %s69, 1
          %s702 = smul.addr %s701, 16
          %s703 = scalar_lea.vmem [#allocation5], %s702
          %704 = dma.done %s700, 256
        $region40: #{adaptive_hybrid_pool2d.1} parent=35 // pred_fallthru
          _
      $region36: #{adaptive_hybrid_pool2d.1} parent=5 // pred_fallthru
        _
    $region6: #{adaptive_hybrid_pool2d.1} parent=1 // loop_footer
      %s17 = sadd.s32 1, %s13
    $region7: #{adaptive_hybrid_pool2d.1} parent=1 // loop_footer_branch
      %12 = sbr.rel target = $region3
    $region8: #{adaptive_hybrid_pool2d.1} parent=1 // loop_exit
      _
    %705 = vsyncpa [#allocation3], 1
    %s706 = scalar_lea.sflag [#allocation3], 1
    %707 = vsyncpa %s706, 1
    %708 = vsyncpa [#allocation4], 1
    %s709 = scalar_lea.sflag [#allocation4], 1
    %710 = vsyncpa %s709, 1

</llo_original>
